<compile_context>
chip_gen: v7x
topology: tpu7x:2x2x1
jax: 0.10.0
libtpu: 0.0.40
codegen_flags: <defaults>
</compile_context>

<pallas_src>
import functools

import jax
import jax.numpy as jnp
from jax.experimental import pallas as pl
from jax.experimental.pallas import tpu as pltpu

ALPHA = 0.2          # LeakyReLU negative slope (module default)
LN_EPS = 1e-5        # nn.LayerNorm default eps
NEG_INF = -1e30      # bias on padded community columns -> softmax prob exactly 0
LANE = 128


def _round_up(x, m):
    return (x + m - 1) // m * m


def _cdiv(a, b):
    return (a + b - 1) // b


# --------------------------------------------------------------------------- #
# Kernel 1: Linear -> LayerNorm -> LeakyReLU -> Linear -> softmax  => P
#           plus accumulation of Z^T P and column sums of P (for X_tilde).
# --------------------------------------------------------------------------- #
def _assign_kernel(z_ref, w1_ref, b1_ref, g_ref, be_ref, w2_ref, b2_ref,
                   p_ref, ztp_ref, colsum_ref, *, last_valid_rows):
    i = pl.program_id(0)

    @pl.when(i == 0)
    def _():
        ztp_ref[...] = jnp.zeros_like(ztp_ref)
        colsum_ref[...] = jnp.zeros_like(colsum_ref)

    z = z_ref[...]                                   # (tb, q) f32
    cdt = w1_ref.dtype                               # MXU input dtype (f32 or bf16)

    # transform: (tb, q) @ (q, q), f32 accumulation
    m = jnp.dot(z.astype(cdt), w1_ref[...],
                preferred_element_type=jnp.float32) + b1_ref[...]

    # LayerNorm over the feature axis (biased variance, eps inside sqrt)
    mu = jnp.mean(m, axis=-1, keepdims=True)
    var = jnp.mean(jnp.square(m - mu), axis=-1, keepdims=True)
    m = (m - mu) * jax.lax.rsqrt(var + LN_EPS) * g_ref[...] + be_ref[...]

    # LeakyReLU
    h = jnp.where(m > 0, m, ALPHA * m)

    # output_linear into the lane-padded community axis (padded cols have -1e30 bias)
    ol = jnp.dot(h.astype(cdt), w2_ref[...],
                 preferred_element_type=jnp.float32) + b2_ref[...]

    # numerically-stable softmax over communities; padded columns -> exp == 0
    ol = ol - jnp.max(ol, axis=-1, keepdims=True)
    e = jnp.exp(ol)
    p = e / jnp.sum(e, axis=-1, keepdims=True)       # (tb, kp) f32

    p_ref[...] = p

    if last_valid_rows is not None:
        # Only the last row tile contains batch padding -> mask only there.
        @pl.when(i == pl.num_programs(0) - 1)
        def _():
            row = jax.lax.broadcasted_iota(jnp.int32, p_ref.shape, 0)
            p_ref[...] = jnp.where(row < last_valid_rows, p_ref[...], 0.0)
        p = p_ref[...]

    # X_tilde pieces: Z^T P (padded Z rows are zero) and column sums of P.
    ztp_ref[...] += jax.lax.dot_general(
        z, p, (((0,), (0,)), ((), ())), preferred_element_type=jnp.float32)
    colsum_ref[...] += jnp.sum(p, axis=0, keepdims=True)


# --------------------------------------------------------------------------- #
# Kernel 2: A_tilde = P^T (A P), A tiled over rows AND columns (bf16 A stream).
#           Grid = (column blocks, row blocks); atil resident accumulator.
# --------------------------------------------------------------------------- #
def _atilde_kernel(a_ref, pcol_ref, prow_ref, atil_ref):
    c = pl.program_id(0)
    i = pl.program_id(1)

    @pl.when(jnp.logical_and(c == 0, i == 0))
    def _():
        atil_ref[...] = jnp.zeros_like(atil_ref)

    # (tb, tc) block of A (bf16, exact for 0/1) against the matching (tc, kp) rows
    # of P, f32 accumulation; then fold into P^T (.) with the (tb, kp) P row block.
    ap = jnp.dot(a_ref[...].astype(jnp.float32), pcol_ref[...],
                 preferred_element_type=jnp.float32)           # (tb, kp)
    atil_ref[...] += jax.lax.dot_general(
        prow_ref[...], ap, (((0,), (0,)), ((), ())),
        preferred_element_type=jnp.float32)                    # (kp, kp)


# --------------------------------------------------------------------------- #
# Host-side preparation (hoisted out of the per-call path)
# --------------------------------------------------------------------------- #
def prepare_params(w1, b1, ln_gamma, ln_beta, w2, b2, *, compute_dtype=jnp.float32):
    """Transpose weights, pad the community axis to a lane-dense multiple of 128,
    put -1e30 in the padded bias entries, and store the MXU weights in compute_dtype
    (bf16 halves resident weight VMEM/DMA on v6e/v7x when accuracy allows)."""
    w1 = jnp.asarray(w1, jnp.float32)
    w2 = jnp.asarray(w2, jnp.float32)
    q = w1.shape[0]
    k = w2.shape[0]
    kp = max(LANE, _round_up(k, LANE))

    w2_t = jnp.zeros((q, kp), jnp.float32).at[:, :k].set(w2.T)
    b2_p = jnp.full((1, kp), NEG_INF, jnp.float32).at[0, :k].set(
        jnp.asarray(b2, jnp.float32))

    return dict(
        w1_t=w1.T.astype(compute_dtype),
        b1=jnp.asarray(b1, jnp.float32).reshape(1, q),
        gamma=jnp.asarray(ln_gamma, jnp.float32).reshape(1, q),
        beta=jnp.asarray(ln_beta, jnp.float32).reshape(1, q),
        w2_t=w2_t.astype(compute_dtype),
        b2=b2_p,
        out_comms=k,
    )


def prepare_adjacency(A, dtype=jnp.bfloat16):
    """One-time adjacency cast (exact for 0/1 entries); halves the A HBM stream.
    Hoist this per graph — do not pay it per layer call."""
    return jnp.asarray(A, dtype)


def _choose_tiles(n):
    """Row tile tb (multiple of 8), padded row count n_pad (= nr*tb) and A-column
    tile tc (divides n_pad; multiple of 128 or equal to n_pad)."""
    if n <= 2048:
        nb = _cdiv(n, 512)
        tb = _round_up(_cdiv(n, nb), 8)
        n_pad = nb * tb
        tc = n_pad                      # single column block
    else:
        tb = 512
        n_pad = _round_up(n, 512)
        tc = 2048 if n_pad % 2048 == 0 else (1024 if n_pad % 1024 == 0 else 512)
    return tb, n_pad, tc


# --------------------------------------------------------------------------- #
# Forward pass
# --------------------------------------------------------------------------- #
def comm_dense_layer2(Z, A, params, *, vmem_limit_bytes=None):
    """Forward pass of Comm_DenseLayer2 (operator='Linear').

    Returns (X_tilde, A_tilde, P, S). Pass A pre-cast via prepare_adjacency()
    (bf16) to halve the dominant HBM stream; all accumulation stays f32."""
    N, q = Z.shape
    k = params["out_comms"]
    kp = params["w2_t"].shape[1]

    tb, n_pad, tc = _choose_tiles(N)
    nr = n_pad // tb
    ncb = n_pad // tc

    z_p = jnp.asarray(Z, jnp.float32)
    a_p = jnp.asarray(A)
    if a_p.dtype not in (jnp.bfloat16, jnp.float32):
        a_p = a_p.astype(jnp.float32)

    if n_pad != N:
        # TODO(synk): in-kernel tail masking would avoid this O(N^2) copy.
        z_p = jnp.pad(z_p, ((0, n_pad - N), (0, 0)))
        a_p = jnp.pad(a_p, ((0, n_pad - N), (0, n_pad - N)))

    if vmem_limit_bytes is None:
        a_item = jnp.dtype(a_p.dtype).itemsize
        w_item = jnp.dtype(params["w1_t"].dtype).itemsize
        assign_need = (2 * (tb * q + tb * kp) * 4
                       + 2 * (q * q + q * kp) * w_item
                       + (q * kp + 8 * kp + 8 * q) * 4)
        agg_need = 2 * (tb * tc * a_item + tc * kp * 4 + tb * kp * 4) + 2 * kp * kp * 4
        vmem_limit_bytes = int(max(32 << 20, min(64 << 20,
                                                 2 * max(assign_need, agg_need))))

    last_valid = N - (nr - 1) * tb
    has_tail = last_valid < tb

    # --- pass 1: assignment probabilities + X_tilde partial sums ------------- #
    assign = pl.pallas_call(
        functools.partial(_assign_kernel,
                          last_valid_rows=last_valid if has_tail else None),
        out_shape=(jax.ShapeDtypeStruct((n_pad, kp), jnp.float32),   # P (lane padded)
                   jax.ShapeDtypeStruct((q, kp), jnp.float32),       # Z^T P
                   jax.ShapeDtypeStruct((1, kp), jnp.float32)),      # sum_rows(P)
        grid_spec=pltpu.PrefetchScalarGridSpec(
            num_scalar_prefetch=0,
            grid=(nr,),
            in_specs=[
                pl.BlockSpec((tb, q), lambda i: (i, 0)),    # Z row tile (pipelined)
                pl.BlockSpec((q, q), lambda i: (0, 0)),     # W1^T   (resident)
                pl.BlockSpec((1, q), lambda i: (0, 0)),     # b1
                pl.BlockSpec((1, q), lambda i: (0, 0)),     # LN gamma
                pl.BlockSpec((1, q), lambda i: (0, 0)),     # LN beta
                pl.BlockSpec((q, kp), lambda i: (0, 0)),    # W2^T (lane padded)
                pl.BlockSpec((1, kp), lambda i: (0, 0)),    # b2 (padding = -1e30)
            ],
            out_specs=(pl.BlockSpec((tb, kp), lambda i: (i, 0)),
                       pl.BlockSpec((q, kp), lambda i: (0, 0)),
                       pl.BlockSpec((1, kp), lambda i: (0, 0))),
        ),
        compiler_params=pltpu.CompilerParams(
            dimension_semantics=("arbitrary",),             # accumulators over rows
            vmem_limit_bytes=vmem_limit_bytes),
    )
    p_pad, ztp, colsum = assign(z_p, params["w1_t"], params["b1"],
                                params["gamma"], params["beta"],
                                params["w2_t"], params["b2"])

    # --- pass 2: A_tilde = P^T (A P), A fully tiled --------------------------- #
    atilde = pl.pallas_call(
        _atilde_kernel,
        out_shape=jax.ShapeDtypeStruct((kp, kp), jnp.float32),
        grid_spec=pltpu.PrefetchScalarGridSpec(
            num_scalar_prefetch=0,
            grid=(ncb, nr),
            in_specs=[
                pl.BlockSpec((tb, tc), lambda c, i: (i, c)),   # A block (bf16 stream)
                pl.BlockSpec((tc, kp), lambda c, i: (c, 0)),   # P rows entering A@P
                pl.BlockSpec((tb, kp), lambda c, i: (i, 0)),   # P rows for P^T (.)
            ],
            out_specs=pl.BlockSpec((kp, kp), lambda c, i: (0, 0)),
        ),
        compiler_params=pltpu.CompilerParams(
            dimension_semantics=("arbitrary", "arbitrary"),    # shared accumulator
            vmem_limit_bytes=vmem_limit_bytes),
    )
    atil = atilde(a_p, p_pad, p_pad)

    # Strip batch/lane padding, then the tiny epilogue on real columns only
    # (avoids 1/0 on padded community columns).
    p = p_pad[:N, :k]
    x_tilde = (ztp[:, :k] * (1.0 / colsum[0, :k] + 1e-8)[None, :]).T   # (k, q)
    a_tilde = atil[:k, :k]                                             # (k, k)
    s = jnp.argmax(p, axis=1)                                          # (N,)
    return x_tilde, a_tilde, p, s


# --------------------------------------------------------------------------- #
# Pure-JAX reference (mirrors the PyTorch forward for operator='Linear')
# --------------------------------------------------------------------------- #
def _reference(Z, A, W1, b1, gamma, beta, W2, b2):
    M = Z @ W1.T + b1
    mu = M.mean(axis=-1, keepdims=True)
    var = ((M - mu) ** 2).mean(axis=-1, keepdims=True)
    Mn = (M - mu) / jnp.sqrt(var + LN_EPS) * gamma + beta
    H = jnp.where(Mn > 0, Mn, ALPHA * Mn)
    OL = H @ W2.T + b2
    P = jax.nn.softmax(OL, axis=1)
    X_tilde = ((Z.T @ P) @ jnp.diag(1.0 / P.sum(axis=0) + 1e-8)).T
    A_tilde = P.T @ (A @ P)
    S = jnp.argmax(P, axis=1)
    return X_tilde, A_tilde, P, S


if __name__ == "__main__":
    # Small shapes consistent with the module: N nodes, q=in_features, k=out_comms
    N, q, k = 64, 32, 8

    key = jax.random.PRNGKey(0)
    kz, ka, kw1, kb1, kg, kbe, kw2, kb2 = jax.random.split(key, 8)

    Z = jax.random.normal(kz, (N, q), dtype=jnp.float32)
    A = (jax.random.uniform(ka, (N, N)) < 0.15).astype(jnp.float32)
    A = jnp.maximum(A, A.T) * (1.0 - jnp.eye(N, dtype=jnp.float32))   # symmetric, no self loops

    bound = 1.0 / (q ** 0.5)
    W1 = jax.random.uniform(kw1, (q, q), minval=-bound, maxval=bound, dtype=jnp.float32)
    b1 = jax.random.uniform(kb1, (q,), minval=-bound, maxval=bound, dtype=jnp.float32)
    gamma = 1.0 + 0.1 * jax.random.normal(kg, (q,), dtype=jnp.float32)
    beta = 0.1 * jax.random.normal(kbe, (q,), dtype=jnp.float32)
    W2 = jax.random.uniform(kw2, (k, q), minval=-bound, maxval=bound, dtype=jnp.float32)
    b2 = jax.random.uniform(kb2, (k,), minval=-bound, maxval=bound, dtype=jnp.float32)

    params = prepare_params(W1, b1, gamma, beta, W2, b2)     # one-time (f32 compute)
    A_bf16 = prepare_adjacency(A)                            # one-time bf16 cast (exact)

    x_t, a_t, p, s = comm_dense_layer2(Z, A_bf16, params)
    x_t, a_t, p, s = jax.block_until_ready((x_t, a_t, p, s))

    rx, ra, rp, rs = _reference(Z, A, W1, b1, gamma, beta, W2, b2)

    assert p.shape == (N, k) and x_t.shape == (k, q)
    assert a_t.shape == (k, k) and s.shape == (N,)
    assert jnp.allclose(p, rp, atol=1e-5, rtol=1e-5)
    assert jnp.allclose(x_t, rx, atol=1e-4, rtol=1e-4)
    assert jnp.allclose(a_t, ra, atol=1e-4, rtol=1e-4)
    # hard assignments: allow for ULP-level ties flipping an argmax
    assert float(jnp.mean((s == rs).astype(jnp.float32))) > 0.95

    print("KERNEL_OK")
</pallas_src>

<mosaic_0001>
module attributes {stable_mosaic.version = 11 : i64} {
  func.func @_assign_kernel(%arg0: i32, %arg1: memref<64x32xf32, #tpu.memory_space<vmem>>, %arg2: memref<32x32xf32, #tpu.memory_space<vmem>>, %arg3: memref<1x32xf32, #tpu.memory_space<vmem>>, %arg4: memref<1x32xf32, #tpu.memory_space<vmem>>, %arg5: memref<1x32xf32, #tpu.memory_space<vmem>>, %arg6: memref<32x128xf32, #tpu.memory_space<vmem>>, %arg7: memref<1x128xf32, #tpu.memory_space<vmem>>, %arg8: memref<64x128xf32, #tpu.memory_space<vmem>>, %arg9: memref<32x128xf32, #tpu.memory_space<vmem>>, %arg10: memref<1x128xf32, #tpu.memory_space<vmem>>) attributes {dimension_semantics = [#tpu.dimension_semantics<arbitrary>], iteration_bounds = array<i64: 1>, scalar_prefetch = 0 : i64, scratch_operands = 0 : i64, tpu.core_type = #tpu.core_type<tc>, window_params = [{transform_indices = @transform_0, window_bounds = array<i64: 64, 32>}, {pipeline_mode = #tpu.pipeline_mode<synchronous>, transform_indices = @transform_1, window_bounds = array<i64: 32, 32>}, {pipeline_mode = #tpu.pipeline_mode<synchronous>, transform_indices = @transform_2, window_bounds = array<i64: 1, 32>}, {pipeline_mode = #tpu.pipeline_mode<synchronous>, transform_indices = @transform_3, window_bounds = array<i64: 1, 32>}, {pipeline_mode = #tpu.pipeline_mode<synchronous>, transform_indices = @transform_4, window_bounds = array<i64: 1, 32>}, {pipeline_mode = #tpu.pipeline_mode<synchronous>, transform_indices = @transform_5, window_bounds = array<i64: 32, 128>}, {pipeline_mode = #tpu.pipeline_mode<synchronous>, transform_indices = @transform_6, window_bounds = array<i64: 1, 128>}, {transform_indices = @transform_7, window_bounds = array<i64: 64, 128>}, {pipeline_mode = #tpu.pipeline_mode<synchronous>, transform_indices = @transform_8, window_bounds = array<i64: 32, 128>}, {pipeline_mode = #tpu.pipeline_mode<synchronous>, transform_indices = @transform_9, window_bounds = array<i64: 1, 128>}]} {
    %c0_i32 = arith.constant 0 : i32
    %0 = arith.cmpi eq, %arg0, %c0_i32 : i32
    %1 = arith.extui %0 : i1 to i32
    %c0_i32_0 = arith.constant 0 : i32
    %2 = arith.cmpi ne, %1, %c0_i32_0 : i32
    scf.if %2 {
      %cst_36 = arith.constant 0.000000e+00 : f32
      %62 = vector.broadcast %cst_36 : f32 to vector<32x128xf32>
      %c0_37 = arith.constant 0 : index
      %c0_38 = arith.constant 0 : index
      %63 = vector.load %arg9[%c0_37, %c0_38] : memref<32x128xf32, #tpu.memory_space<vmem>>, vector<32x128xf32>
      tpu.vector_store %arg9[%c0_37, %c0_38], %62 {strides = array<i32>} : memref<32x128xf32, #tpu.memory_space<vmem>>, vector<32x128xf32>,
      %cst_39 = arith.constant 0.000000e+00 : f32
      %64 = vector.broadcast %cst_39 : f32 to vector<1x128xf32>
      %c0_40 = arith.constant 0 : index
      %c0_41 = arith.constant 0 : index
      %65 = vector.load %arg10[%c0_40, %c0_41] : memref<1x128xf32, #tpu.memory_space<vmem>>, vector<1x128xf32>
      tpu.vector_store %arg10[%c0_40, %c0_41], %64 {strides = array<i32>} : memref<1x128xf32, #tpu.memory_space<vmem>>, vector<1x128xf32>,
    } else {
    }
    %c0 = arith.constant 0 : index
    %c0_1 = arith.constant 0 : index
    %3 = vector.load %arg1[%c0, %c0_1] : memref<64x32xf32, #tpu.memory_space<vmem>>, vector<64x32xf32>
    %c0_2 = arith.constant 0 : index
    %c0_3 = arith.constant 0 : index
    %4 = vector.load %arg2[%c0_2, %c0_3] : memref<32x32xf32, #tpu.memory_space<vmem>>, vector<32x32xf32>
    %cst = arith.constant dense<0.000000e+00> : vector<64x32xf32>
    %5 = tpu.matmul %3, %4, %cst {dimension_numbers = #tpu.dot_dimension_numbers<[1], [0], [0], [1], [0, 0, 1, 1], [], []>} : vector<64x32xf32>, vector<32x32xf32>, vector<64x32xf32> -> vector<64x32xf32>
    %c0_4 = arith.constant 0 : index
    %c0_5 = arith.constant 0 : index
    %6 = vector.load %arg3[%c0_4, %c0_5] : memref<1x32xf32, #tpu.memory_space<vmem>>, vector<1x32xf32>
    %7 = vector.broadcast %6 : vector<1x32xf32> to vector<64x32xf32>
    %8 = arith.addf %5, %7 : vector<64x32xf32>
    %cst_6 = arith.constant dense<0.000000e+00> : vector<64xf32>
    %9 = vector.multi_reduction <add>, %8, %cst_6 [1] : vector<64x32xf32> to vector<64xf32>
    %10 = vector.shape_cast %9 : vector<64xf32> to vector<64x1xf32>
    %cst_7 = arith.constant 3.200000e+01 : f32
    %11 = vector.broadcast %cst_7 : f32 to vector<64x1xf32>
    %12 = arith.divf %10, %11 : vector<64x1xf32>
    %13 = vector.broadcast %12 : vector<64x1xf32> to vector<64x32xf32>
    %14 = arith.subf %8, %13 : vector<64x32xf32>
    %15 = arith.mulf %14, %14 : vector<64x32xf32>
    %cst_8 = arith.constant dense<0.000000e+00> : vector<64xf32>
    %16 = vector.multi_reduction <add>, %15, %cst_8 [1] : vector<64x32xf32> to vector<64xf32>
    %17 = vector.shape_cast %16 : vector<64xf32> to vector<64x1xf32>
    %cst_9 = arith.constant 3.200000e+01 : f32
    %18 = vector.broadcast %cst_9 : f32 to vector<64x1xf32>
    %19 = arith.divf %17, %18 : vector<64x1xf32>
    %20 = vector.broadcast %12 : vector<64x1xf32> to vector<64x32xf32>
    %21 = arith.subf %8, %20 : vector<64x32xf32>
    %cst_10 = arith.constant 9.99999974E-6 : f32
    %22 = vector.broadcast %cst_10 : f32 to vector<64x1xf32>
    %23 = arith.addf %19, %22 : vector<64x1xf32>
    %24 = math.rsqrt %23 : vector<64x1xf32>
    %25 = vector.broadcast %24 : vector<64x1xf32> to vector<64x32xf32>
    %26 = arith.mulf %21, %25 : vector<64x32xf32>
    %c0_11 = arith.constant 0 : index
    %c0_12 = arith.constant 0 : index
    %27 = vector.load %arg4[%c0_11, %c0_12] : memref<1x32xf32, #tpu.memory_space<vmem>>, vector<1x32xf32>
    %28 = vector.broadcast %27 : vector<1x32xf32> to vector<64x32xf32>
    %29 = arith.mulf %26, %28 : vector<64x32xf32>
    %c0_13 = arith.constant 0 : index
    %c0_14 = arith.constant 0 : index
    %30 = vector.load %arg5[%c0_13, %c0_14] : memref<1x32xf32, #tpu.memory_space<vmem>>, vector<1x32xf32>
    %31 = vector.broadcast %30 : vector<1x32xf32> to vector<64x32xf32>
    %32 = arith.addf %29, %31 : vector<64x32xf32>
    %cst_15 = arith.constant 0.000000e+00 : f32
    %33 = vector.broadcast %cst_15 : f32 to vector<64x32xf32>
    %34 = arith.cmpf ogt, %32, %33 : vector<64x32xf32>
    %cst_16 = arith.constant 2.000000e-01 : f32
    %35 = vector.broadcast %cst_16 : f32 to vector<64x32xf32>
    %36 = arith.mulf %35, %32 : vector<64x32xf32>
    %37 = arith.select %34, %32, %36 : vector<64x32xi1>, vector<64x32xf32>
    %c0_17 = arith.constant 0 : index
    %c0_18 = arith.constant 0 : index
    %38 = vector.load %arg6[%c0_17, %c0_18] : memref<32x128xf32, #tpu.memory_space<vmem>>, vector<32x128xf32>
    %cst_19 = arith.constant dense<0.000000e+00> : vector<64x128xf32>
    %39 = tpu.matmul %37, %38, %cst_19 {dimension_numbers = #tpu.dot_dimension_numbers<[1], [0], [0], [1], [0, 0, 1, 1], [], []>} : vector<64x32xf32>, vector<32x128xf32>, vector<64x128xf32> -> vector<64x128xf32>
    %c0_20 = arith.constant 0 : index
    %c0_21 = arith.constant 0 : index
    %40 = vector.load %arg7[%c0_20, %c0_21] : memref<1x128xf32, #tpu.memory_space<vmem>>, vector<1x128xf32>
    %41 = vector.broadcast %40 : vector<1x128xf32> to vector<64x128xf32>
    %42 = arith.addf %39, %41 : vector<64x128xf32>
    %cst_22 = arith.constant dense<0xFF800000> : vector<64xf32>
    %43 = vector.multi_reduction <maximumf>, %42, %cst_22 [1] : vector<64x128xf32> to vector<64xf32>
    %44 = vector.shape_cast %43 : vector<64xf32> to vector<64x1xf32>
    %45 = vector.broadcast %44 : vector<64x1xf32> to vector<64x128xf32>
    %46 = arith.subf %42, %45 : vector<64x128xf32>
    %47 = math.exp %46 : vector<64x128xf32>
    %cst_23 = arith.constant dense<0.000000e+00> : vector<64xf32>
    %48 = vector.multi_reduction <add>, %47, %cst_23 [1] : vector<64x128xf32> to vector<64xf32>
    %49 = vector.shape_cast %48 : vector<64xf32> to vector<64x1xf32>
    %50 = vector.broadcast %49 : vector<64x1xf32> to vector<64x128xf32>
    %51 = arith.divf %47, %50 : vector<64x128xf32>
    %c0_24 = arith.constant 0 : index
    %c0_25 = arith.constant 0 : index
    %52 = vector.load %arg8[%c0_24, %c0_25] : memref<64x128xf32, #tpu.memory_space<vmem>>, vector<64x128xf32>
    tpu.vector_store %arg8[%c0_24, %c0_25], %51 {strides = array<i32>} : memref<64x128xf32, #tpu.memory_space<vmem>>, vector<64x128xf32>,
    %c0_26 = arith.constant 0 : index
    %c0_27 = arith.constant 0 : index
    %53 = vector.load %arg9[%c0_26, %c0_27] : memref<32x128xf32, #tpu.memory_space<vmem>>, vector<32x128xf32>
    %cst_28 = arith.constant dense<0.000000e+00> : vector<32x128xf32>
    %54 = tpu.matmul %3, %51, %cst_28 {dimension_numbers = #tpu.dot_dimension_numbers<[0], [0], [1], [1], [0, 1, 1, 1], [], []>} : vector<64x32xf32>, vector<64x128xf32>, vector<32x128xf32> -> vector<32x128xf32>
    %55 = arith.addf %53, %54 : vector<32x128xf32>
    %c0_29 = arith.constant 0 : index
    %c0_30 = arith.constant 0 : index
    %56 = vector.load %arg9[%c0_29, %c0_30] : memref<32x128xf32, #tpu.memory_space<vmem>>, vector<32x128xf32>
    tpu.vector_store %arg9[%c0_29, %c0_30], %55 {strides = array<i32>} : memref<32x128xf32, #tpu.memory_space<vmem>>, vector<32x128xf32>,
    %c0_31 = arith.constant 0 : index
    %c0_32 = arith.constant 0 : index
    %57 = vector.load %arg10[%c0_31, %c0_32] : memref<1x128xf32, #tpu.memory_space<vmem>>, vector<1x128xf32>
    %cst_33 = arith.constant dense<0.000000e+00> : vector<128xf32>
    %58 = vector.multi_reduction <add>, %51, %cst_33 [0] : vector<64x128xf32> to vector<128xf32>
    %59 = vector.shape_cast %58 : vector<128xf32> to vector<1x128xf32>
    %60 = arith.addf %57, %59 : vector<1x128xf32>
    %c0_34 = arith.constant 0 : index
    %c0_35 = arith.constant 0 : index
    %61 = vector.load %arg10[%c0_34, %c0_35] : memref<1x128xf32, #tpu.memory_space<vmem>>, vector<1x128xf32>
    tpu.vector_store %arg10[%c0_34, %c0_35], %60 {strides = array<i32>} : memref<1x128xf32, #tpu.memory_space<vmem>>, vector<1x128xf32>,
    return
  }
  func.func @transform_0(%arg0: i32) -> (i32, i32) {
    %c0_i32 = arith.constant 0 : i32
    %c0_i32_0 = arith.constant 0 : i32
    return %arg0, %c0_i32 : i32, i32
  }
  func.func @transform_1(%arg0: i32) -> (i32, i32) {
    %c0_i32 = arith.constant 0 : i32
    %c0_i32_0 = arith.constant 0 : i32
    %c0_i32_1 = arith.constant 0 : i32
    return %c0_i32, %c0_i32_0 : i32, i32
  }
  func.func @transform_2(%arg0: i32) -> (i32, i32) {
    %c0_i32 = arith.constant 0 : i32
    %c0_i32_0 = arith.constant 0 : i32
    %c0_i32_1 = arith.constant 0 : i32
    return %c0_i32, %c0_i32_0 : i32, i32
  }
  func.func @transform_3(%arg0: i32) -> (i32, i32) {
    %c0_i32 = arith.constant 0 : i32
    %c0_i32_0 = arith.constant 0 : i32
    %c0_i32_1 = arith.constant 0 : i32
    return %c0_i32, %c0_i32_0 : i32, i32
  }
  func.func @transform_4(%arg0: i32) -> (i32, i32) {
    %c0_i32 = arith.constant 0 : i32
    %c0_i32_0 = arith.constant 0 : i32
    %c0_i32_1 = arith.constant 0 : i32
    return %c0_i32, %c0_i32_0 : i32, i32
  }
  func.func @transform_5(%arg0: i32) -> (i32, i32) {
    %c0_i32 = arith.constant 0 : i32
    %c0_i32_0 = arith.constant 0 : i32
    %c0_i32_1 = arith.constant 0 : i32
    return %c0_i32, %c0_i32_0 : i32, i32
  }
  func.func @transform_6(%arg0: i32) -> (i32, i32) {
    %c0_i32 = arith.constant 0 : i32
    %c0_i32_0 = arith.constant 0 : i32
    %c0_i32_1 = arith.constant 0 : i32
    return %c0_i32, %c0_i32_0 : i32, i32
  }
  func.func @transform_7(%arg0: i32) -> (i32, i32) {
    %c0_i32 = arith.constant 0 : i32
    %c0_i32_0 = arith.constant 0 : i32
    return %arg0, %c0_i32 : i32, i32
  }
  func.func @transform_8(%arg0: i32) -> (i32, i32) {
    %c0_i32 = arith.constant 0 : i32
    %c0_i32_0 = arith.constant 0 : i32
    %c0_i32_1 = arith.constant 0 : i32
    return %c0_i32, %c0_i32_0 : i32, i32
  }
  func.func @transform_9(%arg0: i32) -> (i32, i32) {
    %c0_i32 = arith.constant 0 : i32
    %c0_i32_0 = arith.constant 0 : i32
    %c0_i32_1 = arith.constant 0 : i32
    return %c0_i32, %c0_i32_0 : i32, i32
  }
}

</mosaic_0001>

<llo_original>
// kernel: tpu_custom_call.1
$region0: #{tpu_custom_call.1}
  #allocation0 [shape = 'u32[]', space=smem, size = 0x4, offset = 0x4, fixed_abs, tag = 'smem constant byte address 0x4 - core index']
  #allocation1 [shape = 'u32[144,128]{1,0:T(1,128)}', space=vmem, size = 0x12000, scoped, tag = 'internal scratch']
  %s0 = inlined_call_operand.vmem [shape: f32[64,32], index: 0, kind: input, shape index: {}]
  %s1 = inlined_call_operand.vmem [shape: f32[32,32], index: 1, kind: input, shape index: {}]
  %s2 = inlined_call_operand.vmem [shape: f32[1,32], index: 2, kind: input, shape index: {}]
  %s3 = inlined_call_operand.vmem [shape: f32[1,32], index: 3, kind: input, shape index: {}]
  %s4 = inlined_call_operand.vmem [shape: f32[1,32], index: 4, kind: input, shape index: {}]
  %s5 = inlined_call_operand.vmem [shape: f32[32,128], index: 5, kind: input, shape index: {}]
  %s6 = inlined_call_operand.vmem [shape: f32[1,128], index: 6, kind: input, shape index: {}]
  %s7 = inlined_call_operand.hbm [shape: f32[64,128], index: 7, kind: output, shape index: {0}]
  %s8 = inlined_call_operand.hbm [shape: f32[32,128], index: 8, kind: output, shape index: {1}]
  %s9 = inlined_call_operand.hbm [shape: f32[1,128], index: 9, kind: output, shape index: {2}]
  %10 = xla_tuple %s7, %s8, %s9
  %s11 = sld [smem:[#allocation0]]
  $region58: #{tpu_custom_call.1} parent=0
    _
  %s13 = ssub.s32 1, %s11
  %s14 = scalar_select 0, %s13, %s11
  $region1: #{tpu_custom_call.1} parent=0
    #allocation2 [shape = 'u8[32768]{0}', space=vmem, size = 0x8000, scoped, tag = 'output window, operand 0, single buffered']
    #allocation3 [shape = 's32[1]{0}', space=sflag, size = 0x4, scoped, tag = 'scoped memory for tpu_custom_call.1']
    #allocation4 [shape = 'u8[16384]{0}', space=vmem, size = 0x4000, scoped, tag = 'output window, operand 1, single buffered']
    #allocation5 [shape = 's32[1]{0}', space=sflag, size = 0x4, scoped, tag = 'scoped memory for tpu_custom_call.1']
    #allocation6 [shape = 'u8[512]{0}', space=vmem, size = 0x400, scoped, tag = 'output window, operand 2, single buffered']
    %15 = vsyncpa [#allocation3], 0
    %16 = vsyncpa [#allocation5], 0
    // Predicated region
    $region2: #{tpu_custom_call.1} parent=1 // pred_check
      _
    $region3: #{tpu_custom_call.1} parent=1 // pred_check_branch
      %18 = sbr.rel (0) target = $region5
    $region4: #{tpu_custom_call.1} parent=1 // pred_region
      _
    $region5: #{tpu_custom_call.1} parent=1 // pred_fallthru
      _
    // Predicated region
    $region6: #{tpu_custom_call.1} parent=1 // pred_check
      _
    $region7: #{tpu_custom_call.1} parent=1 // pred_check_branch
      %20 = sbr.rel (0) target = $region9
    $region8: #{tpu_custom_call.1} parent=1 // pred_region
      _
    $region9: #{tpu_custom_call.1} parent=1 // pred_fallthru
      _
    // Predicated region
    $region10: #{tpu_custom_call.1} parent=1 // pred_check
      _
    $region11: #{tpu_custom_call.1} parent=1 // pred_check_branch
      %22 = sbr.rel (0) target = $region13
    $region12: #{tpu_custom_call.1} parent=1 // pred_region
      _
    $region13: #{tpu_custom_call.1} parent=1 // pred_fallthru
      _
    // Predicated region
    $region14: #{tpu_custom_call.1} parent=1 // pred_check
      _
    $region15: #{tpu_custom_call.1} parent=1 // pred_check_branch
      %24 = sbr.rel (0) target = $region17
    $region16: #{tpu_custom_call.1} parent=1 // pred_region
      _
    $region17: #{tpu_custom_call.1} parent=1 // pred_fallthru
      _
    // Predicated region
    $region18: #{tpu_custom_call.1} parent=1 // pred_check
      _
    $region19: #{tpu_custom_call.1} parent=1 // pred_check_branch
      %26 = sbr.rel (0) target = $region21
    $region20: #{tpu_custom_call.1} parent=1 // pred_region
      _
    $region21: #{tpu_custom_call.1} parent=1 // pred_fallthru
      _
    // Predicated region
    $region22: #{tpu_custom_call.1} parent=1 // pred_check
      _
    $region23: #{tpu_custom_call.1} parent=1 // pred_check_branch
      %28 = sbr.rel (0) target = $region25
    $region24: #{tpu_custom_call.1} parent=1 // pred_region
      _
    $region25: #{tpu_custom_call.1} parent=1 // pred_fallthru
      _
    // Predicated region
    $region26: #{tpu_custom_call.1} parent=1 // pred_check
      _
    $region27: #{tpu_custom_call.1} parent=1 // pred_check_branch
      %30 = sbr.rel (0) target = $region29
    $region28: #{tpu_custom_call.1} parent=1 // pred_region
      _
    $region29: #{tpu_custom_call.1} parent=1 // pred_fallthru
      _
    %p31 = scmp.eq.s32.totalorder 0, 0
    // Predicated region
    $region30: #{tpu_custom_call.1} parent=1 // pred_check
      %p32 = pneg %p31
    $region31: #{tpu_custom_call.1} parent=1 // pred_check_branch
      %34 = sbr.rel (%p32) target = $region33
    $region32: #{tpu_custom_call.1} parent=1 // pred_region
      %35 = vst [vmem:[#allocation4] sm:$0xff] 0.0
      %36 = vst [vmem:[#allocation4 + $0x8] sm:$0xff] 0.0
      %37 = vst [vmem:[#allocation4 + $0x10] sm:$0xff] 0.0
      %38 = vst [vmem:[#allocation4 + $0x18] sm:$0xff] 0.0
      %39 = vst [vmem:[#allocation6] sm:$0x1] 0.0
    $region33: #{tpu_custom_call.1} parent=1 // pred_fallthru
      _
    %v40 = vld [vmem:[%s0] sm:$0xff]
    %v41 = vld [vmem:[%s0 + $0x8] sm:$0xff]
    %v42 = vld [vmem:[%s0 + $0x10] sm:$0xff]
    %v43 = vld [vmem:[%s0 + $0x18] sm:$0xff]
    %v44 = vld [vmem:[%s0 + $0x20] sm:$0xff]
    %v45 = vld [vmem:[%s0 + $0x28] sm:$0xff]
    %v46 = vld [vmem:[%s0 + $0x30] sm:$0xff]
    %v47 = vld [vmem:[%s0 + $0x38] sm:$0xff]
    %v48 = vld [vmem:[%s1] sm:$0xff]
    %v49 = vld [vmem:[%s1 + $0x8] sm:$0xff]
    %v50 = vld [vmem:[%s1 + $0x10] sm:$0xff]
    %v51 = vld [vmem:[%s1 + $0x18] sm:$0xff]
    %v52 = vld [vmem:[%s2] sm:$0x1]
    %v54 = vlaneseq
    %v55 = vshrl.u32 %v54, 7
    %v56 = vsub.s32 0, %v55
    %v57 = vrot.slane %v52, %v56
    %vm59 = vcmask 261120
    %v61 = vsel %vm59, %v40, 0
    %v64 = vsel %vm59, %v41, 0
    %v67 = vsel %vm59, %v42, 0
    %v70 = vsel %vm59, %v43, 0
    %v73 = vsel %vm59, %v44, 0
    %v76 = vsel %vm59, %v45, 0
    %v79 = vsel %vm59, %v46, 0
    %v82 = vsel %vm59, %v47, 0
    %84 = vmatprep.subr.mxu0 0.0
    %85 = vmatpush1.msra.mxu0 %v48
    %86 = vmatprep.subr.mxu0 0.0
    %87 = vmatpush1.msra.mxu0 %v49
    %88 = vmatprep.subr.mxu0 0.0
    %89 = vmatpush1.msra.mxu0 %v50
    %90 = vmatprep.subr.mxu0 0.0
    %91 = vmatpush1.msra.mxu0 %v51
    %92 = vmatprep.subr.mxu0 0.0
    %93 = vmatpush1.msra.mxu0 0.0
    %94 = vmatprep.subr.mxu0 0.0
    %95 = vmatpush1.msra.mxu0 0.0
    %96 = vmatprep.subr.mxu0 0.0
    %97 = vmatpush1.msra.mxu0 0.0
    %98 = vmatprep.subr.mxu0 0.0
    %99 = vmatpush1.msra.mxu0 0.0
    %100 = vmatprep.subr.mxu0 0.0
    %101 = vmatpush1.msra.mxu0 0.0
    %102 = vmatprep.subr.mxu0 0.0
    %103 = vmatpush1.msra.mxu0 0.0
    %104 = vmatprep.subr.mxu0 0.0
    %105 = vmatpush1.msra.mxu0 0.0
    %106 = vmatprep.subr.mxu0 0.0
    %107 = vmatpush1.msra.mxu0 0.0
    %108 = vmatprep.subr.mxu0 0.0
    %109 = vmatpush1.msra.mxu0 0.0
    %110 = vmatprep.subr.mxu0 0.0
    %111 = vmatpush1.msra.mxu0 0.0
    %112 = vmatprep.subr.mxu0 0.0
    %113 = vmatpush1.msra.mxu0 0.0
    %114 = vmatprep.subr.mxu0 0.0
    %115 = vmatpush1.msra.mxu0 0.0
    %116 = vmatprep.subr.mxu0 0.0
    %117 = vmatpush1.msra.mxu0 0.0
    %118 = vmatprep.subr.mxu0 0.0
    %119 = vmatpush1.msra.mxu0 0.0
    %120 = vmatprep.subr.mxu0 0.0
    %121 = vmatpush1.msra.mxu0 0.0
    %122 = vmatprep.subr.mxu0 0.0
    %123 = vmatpush1.msra.mxu0 0.0
    %124 = vmatprep.subr.mxu0 0.0
    %125 = vmatpush1.msra.mxu0 0.0
    %126 = vmatprep.subr.mxu0 0.0
    %127 = vmatpush1.msra.mxu0 0.0
    %128 = vmatprep.subr.mxu0 0.0
    %129 = vmatpush1.msra.mxu0 0.0
    %130 = vmatprep.subr.mxu0 0.0
    %131 = vmatpush1.msra.mxu0 0.0
    %132 = vmatprep.subr.mxu0 0.0
    %133 = vmatpush1.msra.mxu0 0.0
    %134 = vmatprep.subr.mxu0 0.0
    %135 = vmatpush1.msra.mxu0 0.0
    %136 = vmatprep.subr.mxu0 0.0
    %137 = vmatpush1.msra.mxu0 0.0
    %138 = vmatprep.subr.mxu0 0.0
    %139 = vmatpush1.msra.mxu0 0.0
    %140 = vmatprep.subr.mxu0 0.0
    %141 = vmatpush1.msra.mxu0 0.0
    %142 = vmatprep.subr.mxu0 0.0
    %143 = vmatpush1.msra.mxu0 0.0
    %144 = vmatprep.subr.mxu0 0.0
    %145 = vmatpush1.msra.mxu0 0.0
    %146 = vmatprep.subr.mxu0 0.0
    %147 = vmatpush1.msra.mxu0 0.0
    %148 = vmatprep.mubr.f32.mxu0 0.0
    %149 = vmatmul.mubr.f32.gmra.mrb[0].mxu0 %v61
    %v150 = vpop.f32.mrb[0].mxu0
    %v151 = vadd.f32 %v57, %v150
    %v152 = vpop.f32.mrb[0].mxu0
    %153 = vmatprep.mubr.f32.mxu0 0.0
    %154 = vmatmul.mubr.f32.gmra.mrb[0].mxu0 %v64
    %v155 = vpop.f32.mrb[0].mxu0
    %v156 = vadd.f32 %v57, %v155
    %v157 = vpop.f32.mrb[0].mxu0
    %158 = vmatprep.mubr.f32.mxu0 0.0
    %159 = vmatmul.mubr.f32.gmra.mrb[0].mxu0 %v67
    %v160 = vpop.f32.mrb[0].mxu0
    %v161 = vadd.f32 %v57, %v160
    %v162 = vpop.f32.mrb[0].mxu0
    %163 = vmatprep.mubr.f32.mxu0 0.0
    %164 = vmatmul.mubr.f32.gmra.mrb[0].mxu0 %v70
    %v165 = vpop.f32.mrb[0].mxu0
    %v166 = vadd.f32 %v57, %v165
    %v167 = vpop.f32.mrb[0].mxu0
    %168 = vmatprep.mubr.f32.mxu0 0.0
    %169 = vmatmul.mubr.f32.gmra.mrb[0].mxu0 %v73
    %v170 = vpop.f32.mrb[0].mxu0
    %v171 = vadd.f32 %v57, %v170
    %v172 = vpop.f32.mrb[0].mxu0
    %173 = vmatprep.mubr.f32.mxu0 0.0
    %174 = vmatmul.mubr.f32.gmra.mrb[0].mxu0 %v76
    %v175 = vpop.f32.mrb[0].mxu0
    %v176 = vadd.f32 %v57, %v175
    %v177 = vpop.f32.mrb[0].mxu0
    %178 = vmatprep.mubr.f32.mxu0 0.0
    %179 = vmatmul.mubr.f32.gmra.mrb[0].mxu0 %v79
    %v180 = vpop.f32.mrb[0].mxu0
    %v181 = vadd.f32 %v57, %v180
    %v182 = vpop.f32.mrb[0].mxu0
    %183 = vmatprep.mubr.f32.mxu0 0.0
    %184 = vmatmul.mubr.f32.gmra.mrb[0].mxu0 %v82
    %v185 = vpop.f32.mrb[0].mxu0
    %v186 = vadd.f32 %v57, %v185
    %v187 = vpop.f32.mrb[0].mxu0
    %188 = vdwg.mxu0
    %v189 = vsel %vm59, %v151, 0.0
    %190 = vadd.xlane.f32.xlu0 %v189
    %v191 = vpop.xlane.xlu0 %190
    %v192 = vsel %vm59, %v156, 0.0
    %193 = vadd.xlane.f32.xlu0 %v192
    %v194 = vpop.xlane.xlu0 %193
    %v195 = vsel %vm59, %v161, 0.0
    %196 = vadd.xlane.f32.xlu0 %v195
    %v197 = vpop.xlane.xlu0 %196
    %v198 = vsel %vm59, %v166, 0.0
    %199 = vadd.xlane.f32.xlu0 %v198
    %v200 = vpop.xlane.xlu0 %199
    %v201 = vsel %vm59, %v171, 0.0
    %202 = vadd.xlane.f32.xlu0 %v201
    %v203 = vpop.xlane.xlu0 %202
    %v204 = vsel %vm59, %v176, 0.0
    %205 = vadd.xlane.f32.xlu0 %v204
    %v206 = vpop.xlane.xlu0 %205
    %v207 = vsel %vm59, %v181, 0.0
    %208 = vadd.xlane.f32.xlu0 %v207
    %v209 = vpop.xlane.xlu0 %208
    %v210 = vsel %vm59, %v186, 0.0
    %211 = vadd.xlane.f32.xlu0 %v210
    %v212 = vpop.xlane.xlu0 %211
    %v213 = vrcp.pop 32.0
    %v214 = vmul.f32 %v191, %v213
    %v215 = vmul.f32 %v194, %v213
    %v216 = vmul.f32 %v197, %v213
    %v217 = vmul.f32 %v200, %v213
    %v218 = vmul.f32 %v203, %v213
    %v219 = vmul.f32 %v206, %v213
    %v220 = vmul.f32 %v209, %v213
    %v221 = vmul.f32 %v212, %v213
    %v222 = vsub.f32 %v151, %v214
    %v223 = vsub.f32 %v156, %v215
    %v224 = vsub.f32 %v161, %v216
    %v225 = vsub.f32 %v166, %v217
    %v226 = vsub.f32 %v171, %v218
    %v227 = vsub.f32 %v176, %v219
    %v228 = vsub.f32 %v181, %v220
    %v229 = vsub.f32 %v186, %v221
    %v230 = vmul.f32 %v222, %v222
    %v231 = vmul.f32 %v223, %v223
    %v232 = vmul.f32 %v224, %v224
    %v233 = vmul.f32 %v225, %v225
    %v234 = vmul.f32 %v226, %v226
    %v235 = vmul.f32 %v227, %v227
    %v236 = vmul.f32 %v228, %v228
    %v237 = vmul.f32 %v229, %v229
    %v238 = vsel %vm59, %v230, 0.0
    %239 = vadd.xlane.f32.xlu0 %v238
    %v240 = vpop.xlane.xlu0 %239
    %v241 = vsel %vm59, %v231, 0.0
    %242 = vadd.xlane.f32.xlu0 %v241
    %v243 = vpop.xlane.xlu0 %242
    %v244 = vsel %vm59, %v232, 0.0
    %245 = vadd.xlane.f32.xlu0 %v244
    %v246 = vpop.xlane.xlu0 %245
    %v247 = vsel %vm59, %v233, 0.0
    %248 = vadd.xlane.f32.xlu0 %v247
    %v249 = vpop.xlane.xlu0 %248
    %v250 = vsel %vm59, %v234, 0.0
    %251 = vadd.xlane.f32.xlu0 %v250
    %v252 = vpop.xlane.xlu0 %251
    %v253 = vsel %vm59, %v235, 0.0
    %254 = vadd.xlane.f32.xlu0 %v253
    %v255 = vpop.xlane.xlu0 %254
    %v256 = vsel %vm59, %v236, 0.0
    %257 = vadd.xlane.f32.xlu0 %v256
    %v258 = vpop.xlane.xlu0 %257
    %v259 = vsel %vm59, %v237, 0.0
    %260 = vadd.xlane.f32.xlu0 %v259
    %v261 = vpop.xlane.xlu0 %260
    %v262 = vmul.f32 %v240, %v213
    %v263 = vmul.f32 %v243, %v213
    %v264 = vmul.f32 %v246, %v213
    %v265 = vmul.f32 %v249, %v213
    %v266 = vmul.f32 %v252, %v213
    %v267 = vmul.f32 %v255, %v213
    %v268 = vmul.f32 %v258, %v213
    %v269 = vmul.f32 %v261, %v213
    %v270 = vadd.f32 %v262, 1e-05
    %v271 = vadd.f32 %v263, 1e-05
    %v272 = vadd.f32 %v264, 1e-05
    %v273 = vadd.f32 %v265, 1e-05
    %v274 = vadd.f32 %v266, 1e-05
    %v275 = vadd.f32 %v267, 1e-05
    %v276 = vadd.f32 %v268, 1e-05
    %v277 = vadd.f32 %v269, 1e-05
    %v278 = vrsqrt.pop %v270
    %v279 = vrsqrt.pop %v271
    %v280 = vrsqrt.pop %v272
    %v281 = vrsqrt.pop %v273
    %v282 = vrsqrt.pop %v274
    %v283 = vrsqrt.pop %v275
    %v284 = vrsqrt.pop %v276
    %v285 = vrsqrt.pop %v277
    %v286 = vmul.f32 %v222, %v278
    %v287 = vmul.f32 %v223, %v279
    %v288 = vmul.f32 %v224, %v280
    %v289 = vmul.f32 %v225, %v281
    %v290 = vmul.f32 %v226, %v282
    %v291 = vmul.f32 %v227, %v283
    %v292 = vmul.f32 %v228, %v284
    %v293 = vmul.f32 %v229, %v285
    %v294 = vld [vmem:[%s3] sm:$0x1]
    %v296 = vlaneseq
    %v297 = vshrl.u32 %v296, 7
    %v298 = vsub.s32 0, %v297
    %v299 = vrot.slane %v294, %v298
    %v301 = vmul.f32 %v286, %v299
    %v302 = vmul.f32 %v287, %v299
    %v303 = vmul.f32 %v288, %v299
    %v304 = vmul.f32 %v289, %v299
    %v305 = vmul.f32 %v290, %v299
    %v306 = vmul.f32 %v291, %v299
    %v307 = vmul.f32 %v292, %v299
    %v308 = vmul.f32 %v293, %v299
    %v309 = vld [vmem:[%s4] sm:$0x1]
    %v311 = vlaneseq
    %v312 = vshrl.u32 %v311, 7
    %v313 = vsub.s32 0, %v312
    %v314 = vrot.slane %v309, %v313
    %v316 = vadd.f32 %v301, %v314
    %v317 = vadd.f32 %v302, %v314
    %v318 = vadd.f32 %v303, %v314
    %v319 = vadd.f32 %v304, %v314
    %v320 = vadd.f32 %v305, %v314
    %v321 = vadd.f32 %v306, %v314
    %v322 = vadd.f32 %v307, %v314
    %v323 = vadd.f32 %v308, %v314
    %vm324 = vcmp.gt.f32.partialorder %v316, 0.0
    %vm325 = vcmp.gt.f32.partialorder %v317, 0.0
    %vm326 = vcmp.gt.f32.partialorder %v318, 0.0
    %vm327 = vcmp.gt.f32.partialorder %v319, 0.0
    %vm328 = vcmp.gt.f32.partialorder %v320, 0.0
    %vm329 = vcmp.gt.f32.partialorder %v321, 0.0
    %vm330 = vcmp.gt.f32.partialorder %v322, 0.0
    %vm331 = vcmp.gt.f32.partialorder %v323, 0.0
    %v332 = vmul.f32 %v316, 0.2
    %v333 = vmul.f32 %v317, 0.2
    %v334 = vmul.f32 %v318, 0.2
    %v335 = vmul.f32 %v319, 0.2
    %v336 = vmul.f32 %v320, 0.2
    %v337 = vmul.f32 %v321, 0.2
    %v338 = vmul.f32 %v322, 0.2
    %v339 = vmul.f32 %v323, 0.2
    %v340 = vsel %vm324, %v316, %v332
    %v341 = vsel %vm325, %v317, %v333
    %v342 = vsel %vm326, %v318, %v334
    %v343 = vsel %vm327, %v319, %v335
    %v344 = vsel %vm328, %v320, %v336
    %v345 = vsel %vm329, %v321, %v337
    %v346 = vsel %vm330, %v322, %v338
    %v347 = vsel %vm331, %v323, %v339
    %v348 = vld [vmem:[%s5] sm:$0xff]
    %v349 = vld [vmem:[%s5 + $0x8] sm:$0xff]
    %v350 = vld [vmem:[%s5 + $0x10] sm:$0xff]
    %v351 = vld [vmem:[%s5 + $0x18] sm:$0xff]
    %v352 = vld [vmem:[%s6] sm:$0x1]
    %v354 = vlaneseq
    %v355 = vshrl.u32 %v354, 7
    %v356 = vsub.s32 0, %v355
    %v357 = vrot.slane %v352, %v356
    %v360 = vsel %vm59, %v340, 0
    %v363 = vsel %vm59, %v341, 0
    %v366 = vsel %vm59, %v342, 0
    %v369 = vsel %vm59, %v343, 0
    %v372 = vsel %vm59, %v344, 0
    %v375 = vsel %vm59, %v345, 0
    %v378 = vsel %vm59, %v346, 0
    %v381 = vsel %vm59, %v347, 0
    %383 = vmatprep.subr.mxu0 0.0
    %384 = vmatpush1.msra.mxu0 %v348
    %385 = vmatprep.subr.mxu0 0.0
    %386 = vmatpush1.msra.mxu0 %v349
    %387 = vmatprep.subr.mxu0 0.0
    %388 = vmatpush1.msra.mxu0 %v350
    %389 = vmatprep.subr.mxu0 0.0
    %390 = vmatpush1.msra.mxu0 %v351
    %391 = vmatprep.subr.mxu0 0.0
    %392 = vmatpush1.msra.mxu0 0.0
    %393 = vmatprep.subr.mxu0 0.0
    %394 = vmatpush1.msra.mxu0 0.0
    %395 = vmatprep.subr.mxu0 0.0
    %396 = vmatpush1.msra.mxu0 0.0
    %397 = vmatprep.subr.mxu0 0.0
    %398 = vmatpush1.msra.mxu0 0.0
    %399 = vmatprep.subr.mxu0 0.0
    %400 = vmatpush1.msra.mxu0 0.0
    %401 = vmatprep.subr.mxu0 0.0
    %402 = vmatpush1.msra.mxu0 0.0
    %403 = vmatprep.subr.mxu0 0.0
    %404 = vmatpush1.msra.mxu0 0.0
    %405 = vmatprep.subr.mxu0 0.0
    %406 = vmatpush1.msra.mxu0 0.0
    %407 = vmatprep.subr.mxu0 0.0
    %408 = vmatpush1.msra.mxu0 0.0
    %409 = vmatprep.subr.mxu0 0.0
    %410 = vmatpush1.msra.mxu0 0.0
    %411 = vmatprep.subr.mxu0 0.0
    %412 = vmatpush1.msra.mxu0 0.0
    %413 = vmatprep.subr.mxu0 0.0
    %414 = vmatpush1.msra.mxu0 0.0
    %415 = vmatprep.subr.mxu0 0.0
    %416 = vmatpush1.msra.mxu0 0.0
    %417 = vmatprep.subr.mxu0 0.0
    %418 = vmatpush1.msra.mxu0 0.0
    %419 = vmatprep.subr.mxu0 0.0
    %420 = vmatpush1.msra.mxu0 0.0
    %421 = vmatprep.subr.mxu0 0.0
    %422 = vmatpush1.msra.mxu0 0.0
    %423 = vmatprep.subr.mxu0 0.0
    %424 = vmatpush1.msra.mxu0 0.0
    %425 = vmatprep.subr.mxu0 0.0
    %426 = vmatpush1.msra.mxu0 0.0
    %427 = vmatprep.subr.mxu0 0.0
    %428 = vmatpush1.msra.mxu0 0.0
    %429 = vmatprep.subr.mxu0 0.0
    %430 = vmatpush1.msra.mxu0 0.0
    %431 = vmatprep.subr.mxu0 0.0
    %432 = vmatpush1.msra.mxu0 0.0
    %433 = vmatprep.subr.mxu0 0.0
    %434 = vmatpush1.msra.mxu0 0.0
    %435 = vmatprep.subr.mxu0 0.0
    %436 = vmatpush1.msra.mxu0 0.0
    %437 = vmatprep.subr.mxu0 0.0
    %438 = vmatpush1.msra.mxu0 0.0
    %439 = vmatprep.subr.mxu0 0.0
    %440 = vmatpush1.msra.mxu0 0.0
    %441 = vmatprep.subr.mxu0 0.0
    %442 = vmatpush1.msra.mxu0 0.0
    %443 = vmatprep.subr.mxu0 0.0
    %444 = vmatpush1.msra.mxu0 0.0
    %445 = vmatprep.subr.mxu0 0.0
    %446 = vmatpush1.msra.mxu0 0.0
    %447 = vmatprep.mubr.f32.mxu0 0.0
    %448 = vmatmul.mubr.f32.gmra.mrb[0].mxu0 %v360
    %v449 = vpop.f32.mrb[0].mxu0
    %v450 = vadd.f32 %v357, %v449
    %v451 = vpop.f32.mrb[0].mxu0
    %452 = vmatprep.mubr.f32.mxu0 0.0
    %453 = vmatmul.mubr.f32.gmra.mrb[0].mxu0 %v363
    %v454 = vpop.f32.mrb[0].mxu0
    %v455 = vadd.f32 %v357, %v454
    %v456 = vpop.f32.mrb[0].mxu0
    %457 = vmatprep.mubr.f32.mxu0 0.0
    %458 = vmatmul.mubr.f32.gmra.mrb[0].mxu0 %v366
    %v459 = vpop.f32.mrb[0].mxu0
    %v460 = vadd.f32 %v357, %v459
    %v461 = vpop.f32.mrb[0].mxu0
    %462 = vmatprep.mubr.f32.mxu0 0.0
    %463 = vmatmul.mubr.f32.gmra.mrb[0].mxu0 %v369
    %v464 = vpop.f32.mrb[0].mxu0
    %v465 = vadd.f32 %v357, %v464
    %v466 = vpop.f32.mrb[0].mxu0
    %467 = vmatprep.mubr.f32.mxu0 0.0
    %468 = vmatmul.mubr.f32.gmra.mrb[0].mxu0 %v372
    %v469 = vpop.f32.mrb[0].mxu0
    %v470 = vadd.f32 %v357, %v469
    %v471 = vpop.f32.mrb[0].mxu0
    %472 = vmatprep.mubr.f32.mxu0 0.0
    %473 = vmatmul.mubr.f32.gmra.mrb[0].mxu0 %v375
    %v474 = vpop.f32.mrb[0].mxu0
    %v475 = vadd.f32 %v357, %v474
    %v476 = vpop.f32.mrb[0].mxu0
    %477 = vmatprep.mubr.f32.mxu0 0.0
    %478 = vmatmul.mubr.f32.gmra.mrb[0].mxu0 %v378
    %v479 = vpop.f32.mrb[0].mxu0
    %v480 = vadd.f32 %v357, %v479
    %v481 = vpop.f32.mrb[0].mxu0
    %482 = vmatprep.mubr.f32.mxu0 0.0
    %483 = vmatmul.mubr.f32.gmra.mrb[0].mxu0 %v381
    %v484 = vpop.f32.mrb[0].mxu0
    %v485 = vadd.f32 %v357, %v484
    %v486 = vpop.f32.mrb[0].mxu0
    %487 = vdwg.mxu0
    %488 = vmax.xlane.f32.xlu0 %v450
    %v489 = vpop.xlane.xlu0 %488
    %490 = vmax.xlane.f32.xlu0 %v455
    %v491 = vpop.xlane.xlu0 %490
    %492 = vmax.xlane.f32.xlu0 %v460
    %v493 = vpop.xlane.xlu0 %492
    %494 = vmax.xlane.f32.xlu0 %v465
    %v495 = vpop.xlane.xlu0 %494
    %496 = vmax.xlane.f32.xlu0 %v470
    %v497 = vpop.xlane.xlu0 %496
    %498 = vmax.xlane.f32.xlu0 %v475
    %v499 = vpop.xlane.xlu0 %498
    %500 = vmax.xlane.f32.xlu0 %v480
    %v501 = vpop.xlane.xlu0 %500
    %502 = vmax.xlane.f32.xlu0 %v485
    %v503 = vpop.xlane.xlu0 %502
    %v504 = vsub.f32 %v450, %v489
    %v505 = vsub.f32 %v455, %v491
    %v506 = vsub.f32 %v460, %v493
    %v507 = vsub.f32 %v465, %v495
    %v508 = vsub.f32 %v470, %v497
    %v509 = vsub.f32 %v475, %v499
    %v510 = vsub.f32 %v480, %v501
    %v511 = vsub.f32 %v485, %v503
    %v512 = vmul.f32 %v504, 1.442695
    %v513 = vpow.pop %v512
    %v514 = vmul.f32 %v505, 1.442695
    %v515 = vpow.pop %v514
    %v516 = vmul.f32 %v506, 1.442695
    %v517 = vpow.pop %v516
    %v518 = vmul.f32 %v507, 1.442695
    %v519 = vpow.pop %v518
    %v520 = vmul.f32 %v508, 1.442695
    %v521 = vpow.pop %v520
    %v522 = vmul.f32 %v509, 1.442695
    %v523 = vpow.pop %v522
    %v524 = vmul.f32 %v510, 1.442695
    %v525 = vpow.pop %v524
    %v526 = vmul.f32 %v511, 1.442695
    %v527 = vpow.pop %v526
    %528 = vadd.xlane.f32.xlu0 %v513
    %v529 = vpop.xlane.xlu0 %528
    %530 = vadd.xlane.f32.xlu0 %v515
    %v531 = vpop.xlane.xlu0 %530
    %532 = vadd.xlane.f32.xlu0 %v517
    %v533 = vpop.xlane.xlu0 %532
    %534 = vadd.xlane.f32.xlu0 %v519
    %v535 = vpop.xlane.xlu0 %534
    %536 = vadd.xlane.f32.xlu0 %v521
    %v537 = vpop.xlane.xlu0 %536
    %538 = vadd.xlane.f32.xlu0 %v523
    %v539 = vpop.xlane.xlu0 %538
    %540 = vadd.xlane.f32.xlu0 %v525
    %v541 = vpop.xlane.xlu0 %540
    %542 = vadd.xlane.f32.xlu0 %v527
    %v543 = vpop.xlane.xlu0 %542
    %v544 = vrcp.pop %v529
    %v545 = vmul.f32 %v513, %v544
    %v546 = vrcp.pop %v531
    %v547 = vmul.f32 %v515, %v546
    %v548 = vrcp.pop %v533
    %v549 = vmul.f32 %v517, %v548
    %v550 = vrcp.pop %v535
    %v551 = vmul.f32 %v519, %v550
    %v552 = vrcp.pop %v537
    %v553 = vmul.f32 %v521, %v552
    %v554 = vrcp.pop %v539
    %v555 = vmul.f32 %v523, %v554
    %v556 = vrcp.pop %v541
    %v557 = vmul.f32 %v525, %v556
    %v558 = vrcp.pop %v543
    %v559 = vmul.f32 %v527, %v558
    %560 = vst [vmem:[#allocation2] sm:$0xff] %v545
    %561 = vst [vmem:[#allocation2 + $0x8] sm:$0xff] %v547
    %562 = vst [vmem:[#allocation2 + $0x10] sm:$0xff] %v549
    %563 = vst [vmem:[#allocation2 + $0x18] sm:$0xff] %v551
    %564 = vst [vmem:[#allocation2 + $0x20] sm:$0xff] %v553
    %565 = vst [vmem:[#allocation2 + $0x28] sm:$0xff] %v555
    %566 = vst [vmem:[#allocation2 + $0x30] sm:$0xff] %v557
    %567 = vst [vmem:[#allocation2 + $0x38] sm:$0xff] %v559
    %v568 = vld [vmem:[#allocation4] sm:$0xff]
    %v569 = vld [vmem:[#allocation4 + $0x8] sm:$0xff]
    %v570 = vld [vmem:[#allocation4 + $0x10] sm:$0xff]
    %v571 = vld [vmem:[#allocation4 + $0x18] sm:$0xff]
    %572 = vxpose.xlu0.b32.start [1/16] %v40, 128
    %573 = vxpose.xlu0.b32.cont [2/16] %v41, 128
    %574 = vxpose.xlu0.b32.cont [3/16] %v42, 128
    %575 = vxpose.xlu0.b32.cont [4/16] %v43, 128
    %576 = vxpose.xlu0.b32.cont [5/16] %v44, 128
    %577 = vxpose.xlu0.b32.cont [6/16] %v45, 128
    %578 = vxpose.xlu0.b32.cont [7/16] %v46, 128
    %579 = vxpose.xlu0.b32.cont [8/16] %v47, 128
    %580 = vxpose.xlu0.b32.cont [9/16] 0.0, 128
    %581 = vxpose.xlu0.b32.cont [10/16] 0.0, 128
    %582 = vxpose.xlu0.b32.cont [11/16] 0.0, 128
    %583 = vxpose.xlu0.b32.cont [12/16] 0.0, 128
    %584 = vxpose.xlu0.b32.cont [13/16] 0.0, 128
    %585 = vxpose.xlu0.b32.cont [14/16] 0.0, 128
    %586 = vxpose.xlu0.b32.cont [15/16] 0.0, 128
    %587 = vxpose.xlu0.b32.end [16/16] 0.0, 128
    %v588 = vpop.trf.xlu0
    %v589 = vpop.trf.xlu0
    %v590 = vpop.trf.xlu0
    %v591 = vpop.trf.xlu0
    %v592 = vpop.trf.xlu0
    %v593 = vpop.trf.xlu0
    %v594 = vpop.trf.xlu0
    %v595 = vpop.trf.xlu0
    %v596 = vpop.trf.xlu0
    %v597 = vpop.trf.xlu0
    %v598 = vpop.trf.xlu0
    %v599 = vpop.trf.xlu0
    %v600 = vpop.trf.xlu0
    %v601 = vpop.trf.xlu0
    %v602 = vpop.trf.xlu0
    %v603 = vpop.trf.xlu0
    %vm604 = vcmask 523264
    %v606 = vsel %vm604, %v588, 0
    %v609 = vsel %vm604, %v589, 0
    %v612 = vsel %vm604, %v590, 0
    %v615 = vsel %vm604, %v591, 0
    %617 = vmatprep.subr.mxu0 0.0
    %618 = vmatpush1.msra.mxu0 %v545
    %619 = vmatprep.subr.mxu0 0.0
    %620 = vmatpush1.msra.mxu0 %v547
    %621 = vmatprep.subr.mxu0 0.0
    %622 = vmatpush1.msra.mxu0 %v549
    %623 = vmatprep.subr.mxu0 0.0
    %624 = vmatpush1.msra.mxu0 %v551
    %625 = vmatprep.subr.mxu0 0.0
    %626 = vmatpush1.msra.mxu0 %v553
    %627 = vmatprep.subr.mxu0 0.0
    %628 = vmatpush1.msra.mxu0 %v555
    %629 = vmatprep.subr.mxu0 0.0
    %630 = vmatpush1.msra.mxu0 %v557
    %631 = vmatprep.subr.mxu0 0.0
    %632 = vmatpush1.msra.mxu0 %v559
    %633 = vmatprep.subr.mxu0 0.0
    %634 = vmatpush1.msra.mxu0 0.0
    %635 = vmatprep.subr.mxu0 0.0
    %636 = vmatpush1.msra.mxu0 0.0
    %637 = vmatprep.subr.mxu0 0.0
    %638 = vmatpush1.msra.mxu0 0.0
    %639 = vmatprep.subr.mxu0 0.0
    %640 = vmatpush1.msra.mxu0 0.0
    %641 = vmatprep.subr.mxu0 0.0
    %642 = vmatpush1.msra.mxu0 0.0
    %643 = vmatprep.subr.mxu0 0.0
    %644 = vmatpush1.msra.mxu0 0.0
    %645 = vmatprep.subr.mxu0 0.0
    %646 = vmatpush1.msra.mxu0 0.0
    %647 = vmatprep.subr.mxu0 0.0
    %648 = vmatpush1.msra.mxu0 0.0
    %649 = vmatprep.subr.mxu0 0.0
    %650 = vmatpush1.msra.mxu0 0.0
    %651 = vmatprep.subr.mxu0 0.0
    %652 = vmatpush1.msra.mxu0 0.0
    %653 = vmatprep.subr.mxu0 0.0
    %654 = vmatpush1.msra.mxu0 0.0
    %655 = vmatprep.subr.mxu0 0.0
    %656 = vmatpush1.msra.mxu0 0.0
    %657 = vmatprep.subr.mxu0 0.0
    %658 = vmatpush1.msra.mxu0 0.0
    %659 = vmatprep.subr.mxu0 0.0
    %660 = vmatpush1.msra.mxu0 0.0
    %661 = vmatprep.subr.mxu0 0.0
    %662 = vmatpush1.msra.mxu0 0.0
    %663 = vmatprep.subr.mxu0 0.0
    %664 = vmatpush1.msra.mxu0 0.0
    %665 = vmatprep.subr.mxu0 0.0
    %666 = vmatpush1.msra.mxu0 0.0
    %667 = vmatprep.subr.mxu0 0.0
    %668 = vmatpush1.msra.mxu0 0.0
    %669 = vmatprep.subr.mxu0 0.0
    %670 = vmatpush1.msra.mxu0 0.0
    %671 = vmatprep.subr.mxu0 0.0
    %672 = vmatpush1.msra.mxu0 0.0
    %673 = vmatprep.subr.mxu0 0.0
    %674 = vmatpush1.msra.mxu0 0.0
    %675 = vmatprep.subr.mxu0 0.0
    %676 = vmatpush1.msra.mxu0 0.0
    %677 = vmatprep.subr.mxu0 0.0
    %678 = vmatpush1.msra.mxu0 0.0
    %679 = vmatprep.subr.mxu0 0.0
    %680 = vmatpush1.msra.mxu0 0.0
    %681 = vmatprep.mubr.f32.mxu0 0.0
    %682 = vmatmul.mubr.f32.gmra.mrb[0].mxu0 %v606
    %v683 = vpop.f32.mrb[0].mxu0
    %v684 = vadd.f32 0.0, %v683
    %v685 = vpop.f32.mrb[0].mxu0
    %686 = vmatprep.mubr.f32.mxu0 0.0
    %687 = vmatmul.mubr.f32.gmra.mrb[0].mxu0 %v609
    %v688 = vpop.f32.mrb[0].mxu0
    %v689 = vadd.f32 0.0, %v688
    %v690 = vpop.f32.mrb[0].mxu0
    %691 = vmatprep.mubr.f32.mxu0 0.0
    %692 = vmatmul.mubr.f32.gmra.mrb[0].mxu0 %v612
    %v693 = vpop.f32.mrb[0].mxu0
    %v694 = vadd.f32 0.0, %v693
    %v695 = vpop.f32.mrb[0].mxu0
    %696 = vmatprep.mubr.f32.mxu0 0.0
    %697 = vmatmul.mubr.f32.gmra.mrb[0].mxu0 %v615
    %v698 = vpop.f32.mrb[0].mxu0
    %v699 = vadd.f32 0.0, %v698
    %v700 = vpop.f32.mrb[0].mxu0
    %701 = vdwg.mxu0
    %v702 = vadd.f32 %v568, %v684
    %v703 = vadd.f32 %v569, %v689
    %v704 = vadd.f32 %v570, %v694
    %v705 = vadd.f32 %v571, %v699
    %706 = vst [vmem:[#allocation4] sm:$0xff] %v702
    %707 = vst [vmem:[#allocation4 + $0x8] sm:$0xff] %v703
    %708 = vst [vmem:[#allocation4 + $0x10] sm:$0xff] %v704
    %709 = vst [vmem:[#allocation4 + $0x18] sm:$0xff] %v705
    %v710 = vld [vmem:[#allocation6] sm:$0x1]
    %v711 = vadd.f32 %v545, %v547
    %v712 = vadd.f32 %v711, %v549
    %v713 = vadd.f32 %v712, %v551
    %v714 = vadd.f32 %v713, %v553
    %v715 = vadd.f32 %v714, %v555
    %v716 = vadd.f32 %v715, %v557
    %v717 = vadd.f32 %v716, %v559
    %v718 = vrot.slane %v717, 4
    %v719 = vadd.f32 %v717, %v718
    %v720 = vrot.slane %v719, 2
    %v721 = vadd.f32 %v719, %v720
    %v722 = vrot.slane %v721, 1
    %v723 = vadd.f32 %v721, %v722
    %v724 = vadd.f32 %v710, %v723
    %725 = vst [vmem:[#allocation6] sm:$0x1] %v724
    // Predicated region
    $region34: #{tpu_custom_call.1} parent=1 // pred_check
      _
    $region35: #{tpu_custom_call.1} parent=1 // pred_check_branch
      %727 = sbr.rel (0) target = $region37
    $region36: #{tpu_custom_call.1} parent=1 // pred_region
      %s729 = ssub.s32 1024, 1024
      %730 = vsyncadd [#allocation3], %s729
      %s731 = sshll.u32 [#allocation2], 4
      %s732 = int_to_ptr.vmem [resolvable:$true] %s731
      %737 = dma.vmem_to_hbm [thread:$0]  %s732, 1024, %s7, [#allocation3], 128, 128, 8
    $region37: #{tpu_custom_call.1} parent=1 // pred_fallthru
      _
    // Predicated region
    $region38: #{tpu_custom_call.1} parent=1 // pred_check
      _
    $region39: #{tpu_custom_call.1} parent=1 // pred_check_branch
      %739 = sbr.rel (0) target = $region41
    $region40: #{tpu_custom_call.1} parent=1 // pred_region
      %s741 = ssub.s32 512, 512
      %742 = vsyncadd [#allocation5], %s741
      %s743 = sshll.u32 [#allocation4], 4
      %s744 = int_to_ptr.vmem [resolvable:$true] %s743
      %749 = dma.vmem_to_hbm [thread:$0]  %s744, 512, %s8, [#allocation5], 128, 128, 8
    $region41: #{tpu_custom_call.1} parent=1 // pred_fallthru
      _
    // Predicated region
    $region42: #{tpu_custom_call.1} parent=1 // pred_check
      _
    $region43: #{tpu_custom_call.1} parent=1 // pred_check_branch
      %751 = sbr.rel (0) target = $region45
    $region44: #{tpu_custom_call.1} parent=1 // pred_region
      %s753 = ssub.s32 16, 16
      %754 = vsyncadd [#allocation5], %s753
      %s756 = sshll.u32 [#allocation6], 4
      %s757 = int_to_ptr.vmem [resolvable:$true] %s756
      %759 = dma.vmem_to_hbm [thread:$0]  %s757, 16, %s9, [#allocation5]
    $region45: #{tpu_custom_call.1} parent=1 // pred_fallthru
      _
    // Predicated region
    $region46: #{tpu_custom_call.1} parent=1 // pred_check
      _
    $region47: #{tpu_custom_call.1} parent=1 // pred_check_branch
      %761 = sbr.rel (0) target = $region49
    $region48: #{tpu_custom_call.1} parent=1 // pred_region
      %762 = dma.done [#allocation3], 1024
    $region49: #{tpu_custom_call.1} parent=1 // pred_fallthru
      _
    // Predicated region
    $region50: #{tpu_custom_call.1} parent=1 // pred_check
      _
    $region51: #{tpu_custom_call.1} parent=1 // pred_check_branch
      %764 = sbr.rel (0) target = $region53
    $region52: #{tpu_custom_call.1} parent=1 // pred_region
      %765 = dma.done [#allocation5], 512
    $region53: #{tpu_custom_call.1} parent=1 // pred_fallthru
      _
    // Predicated region
    $region54: #{tpu_custom_call.1} parent=1 // pred_check
      _
    $region55: #{tpu_custom_call.1} parent=1 // pred_check_branch
      %767 = sbr.rel (0) target = $region57
    $region56: #{tpu_custom_call.1} parent=1 // pred_region
      %768 = dma.done [#allocation5], 16
    $region57: #{tpu_custom_call.1} parent=1 // pred_fallthru
      _
    %769 = vsyncpa [#allocation3], 1
    %770 = vsyncpa [#allocation5], 1

</llo_original>
